<compile_context>
chip_gen: v5e
topology: v5e:2x2
jax: 0.10.0
libtpu: 0.0.40
codegen_flags: <defaults>
</compile_context>

<pallas_src>
import functools

import jax
import jax.numpy as jnp
from jax import lax
from jax.experimental import pallas as pl
from jax.experimental.pallas import tpu as pltpu

BN_EPS = 1e-5
LANE = 128


def _round_up(n, m):
    return ((n + m - 1) // m) * m


def _batchnorm_train(h, gamma, beta, inv_n):
    # Single-pass batch stats (biased variance, training mode).
    s1 = jnp.sum(h, axis=0, keepdims=True)
    s2 = jnp.sum(h * h, axis=0, keepdims=True)
    mean = s1 * inv_n
    var = jnp.maximum(s2 * inv_n - mean * mean, 0.0)   # clamp cancellation
    scale = gamma * lax.rsqrt(var + BN_EPS)
    shift = beta - mean * scale
    return h * scale + shift


def _clinician_kernel(x_ref, w1_ref, w2_ref, w3_ref, vec_ref, out_ref,
                      *, hidden_pad, action_pad, inv_n):
    # Packed (8, L) f32 slab: rows = b1, g1, beta1, b2, g2, beta2, b3, <pad>.
    vec = vec_ref[...]
    b1, g1, be1 = vec[0:1, :hidden_pad], vec[1:2, :hidden_pad], vec[2:3, :hidden_pad]
    b2, g2, be2 = vec[3:4, :hidden_pad], vec[4:5, :hidden_pad], vec[5:6, :hidden_pad]
    b3 = vec[6:7, :action_pad]

    # ---- layer 1: Linear (bf16 MXU, f32 acc) + ReLU + BatchNorm ----
    h1 = jnp.dot(x_ref[...], w1_ref[...], preferred_element_type=jnp.float32) + b1
    h1 = jnp.maximum(h1, 0.0)
    h1 = _batchnorm_train(h1, g1, be1, inv_n)

    # ---- layer 2 ----
    h2 = jnp.dot(h1.astype(jnp.bfloat16), w2_ref[...],
                 preferred_element_type=jnp.float32) + b2
    h2 = jnp.maximum(h2, 0.0)
    h2 = _batchnorm_train(h2, g2, be2, inv_n)

    # ---- layer 3: logits, lane-dense (B, action_pad) store ----
    out_ref[...] = (jnp.dot(h2.astype(jnp.bfloat16), w3_ref[...],
                            preferred_element_type=jnp.float32) + b3
                    ).astype(out_ref.dtype)


def pack_params(params, state_dim, action_dim, hidden_dim):
    """Pad feature dims to 128 lanes, cast weights to bf16, pack vectors into one slab."""
    hp = _round_up(hidden_dim, LANE)
    ap = _round_up(action_dim, LANE)
    lanes = max(hp, ap)

    def pad2(w, rows, cols):
        return jnp.pad(w, ((0, rows - w.shape[0]), (0, cols - w.shape[1])))

    w1 = pad2(params["w1"], state_dim, hp).astype(jnp.bfloat16)
    w2 = pad2(params["w2"], hp, hp).astype(jnp.bfloat16)
    w3 = pad2(params["w3"], hp, ap).astype(jnp.bfloat16)

    vec = jnp.zeros((8, lanes), jnp.float32)
    rows = [("b1", hidden_dim), ("g1", hidden_dim), ("beta1", hidden_dim),
            ("b2", hidden_dim), ("g2", hidden_dim), ("beta2", hidden_dim),
            ("b3", action_dim)]
    for i, (name, n) in enumerate(rows):
        vec = vec.at[i, :n].set(params[name].reshape(-1))

    static = {"hidden_pad": hp, "action_pad": ap, "action_dim": action_dim}
    return {"w1": w1, "w2": w2, "w3": w3, "vec": vec}, static


@functools.partial(jax.jit,
                   static_argnames=("hidden_pad", "action_pad", "action_dim"))
def clinician_forward(x, w1, w2, w3, vec, *, hidden_pad, action_pad, action_dim):
    """x: (B, state_dim) f32. Returns logits (B, action_dim) f32."""
    B = x.shape[0]
    vmem = pl.BlockSpec(memory_space=pltpu.MemorySpace.VMEM)
    kernel = functools.partial(_clinician_kernel,
                               hidden_pad=hidden_pad,
                               action_pad=action_pad,
                               inv_n=1.0 / B)
    out = pl.pallas_call(
        kernel,
        out_shape=jax.ShapeDtypeStruct((B, action_pad), jnp.float32),
        in_specs=[vmem] * 5,
        out_specs=vmem,
    )(x.astype(jnp.bfloat16), w1, w2, w3, vec)
    return out[:, :action_dim]


def init_params(key, state_dim, action_dim, hidden_dim):
    """Deterministic init mimicking nn.Linear default (U(-1/sqrt(fan_in), +))."""
    def linear(k, fan_in, fan_out):
        kw, kb = jax.random.split(k)
        bound = 1.0 / jnp.sqrt(jnp.float32(fan_in))
        w = jax.random.uniform(kw, (fan_in, fan_out), jnp.float32, -bound, bound)
        b = jax.random.uniform(kb, (1, fan_out), jnp.float32, -bound, bound)
        return w, b

    k1, k2, k3 = jax.random.split(key, 3)
    w1, b1 = linear(k1, state_dim, hidden_dim)
    w2, b2 = linear(k2, hidden_dim, hidden_dim)
    w3, b3 = linear(k3, hidden_dim, action_dim)
    return {
        "w1": w1, "b1": b1,
        "g1": jnp.ones((1, hidden_dim), jnp.float32),
        "beta1": jnp.zeros((1, hidden_dim), jnp.float32),
        "w2": w2, "b2": b2,
        "g2": jnp.ones((1, hidden_dim), jnp.float32),
        "beta2": jnp.zeros((1, hidden_dim), jnp.float32),
        "w3": w3, "b3": b3,
    }


def reference_forward(x, p):
    """Plain-JAX reference matching the kernel's precision (bf16 matmul operands,
    f32 accumulation, f32 BN math, training-mode batch stats)."""
    bf = jnp.bfloat16

    def mm(a, w):
        return jnp.dot(a.astype(bf), w.astype(bf),
                       preferred_element_type=jnp.float32)

    h1 = jnp.maximum(mm(x, p["w1"]) + p["b1"], 0.0)
    m1 = jnp.mean(h1, axis=0, keepdims=True)
    v1 = jnp.mean((h1 - m1) ** 2, axis=0, keepdims=True)
    h1 = (h1 - m1) / jnp.sqrt(v1 + BN_EPS) * p["g1"] + p["beta1"]

    h2 = jnp.maximum(mm(h1, p["w2"]) + p["b2"], 0.0)
    m2 = jnp.mean(h2, axis=0, keepdims=True)
    v2 = jnp.mean((h2 - m2) ** 2, axis=0, keepdims=True)
    h2 = (h2 - m2) / jnp.sqrt(v2 + BN_EPS) * p["g2"] + p["beta2"]

    return mm(h2, p["w3"]) + p["b3"]


if __name__ == "__main__":
    STATE_DIM = 44    # ClinicianPolicy default state_dim
    ACTION_DIM = 25   # ClinicianPolicy default action_dim
    HIDDEN_DIM = 64   # small hidden size for the synthetic test
    BATCH = 8

    key = jax.random.PRNGKey(0)
    k_params, k_x = jax.random.split(key)
    raw_params = init_params(k_params, STATE_DIM, ACTION_DIM, HIDDEN_DIM)
    packed, static = pack_params(raw_params, STATE_DIM, ACTION_DIM, HIDDEN_DIM)
    x = jax.random.normal(k_x, (BATCH, STATE_DIM), jnp.float32)

    logits = clinician_forward(x, packed["w1"], packed["w2"], packed["w3"],
                               packed["vec"], **static)
    jax.block_until_ready(logits)

    ref = reference_forward(x, raw_params)
    assert logits.shape == (BATCH, ACTION_DIM)
    assert jnp.allclose(logits, ref, atol=5e-3, rtol=5e-3), "mismatch vs reference"

    print("KERNEL_OK")
</pallas_src>

<mosaic_0001>
module attributes {stable_mosaic.version = 11 : i64} {
  func.func @_clinician_kernel(%arg0: memref<8x44xbf16, #tpu.memory_space<vmem>>, %arg1: memref<44x128xbf16, #tpu.memory_space<vmem>>, %arg2: memref<128x128xbf16, #tpu.memory_space<vmem>>, %arg3: memref<128x128xbf16, #tpu.memory_space<vmem>>, %arg4: memref<8x128xf32, #tpu.memory_space<vmem>>, %arg5: memref<8x128xf32, #tpu.memory_space<vmem>>) attributes {dimension_semantics = [], scalar_prefetch = 0 : i64, scratch_operands = 0 : i64, tpu.core_type = #tpu.core_type<tc>} {
    %c0 = arith.constant 0 : index
    %c0_0 = arith.constant 0 : index
    %0 = vector.load %arg4[%c0, %c0_0] : memref<8x128xf32, #tpu.memory_space<vmem>>, vector<8x128xf32>
    %1 = vector.extract_strided_slice %0 {offsets = [0, 0], sizes = [1, 128], strides = [1, 1]} : vector<8x128xf32> to vector<1x128xf32>
    %2 = vector.extract_strided_slice %0 {offsets = [1, 0], sizes = [1, 128], strides = [1, 1]} : vector<8x128xf32> to vector<1x128xf32>
    %3 = vector.extract_strided_slice %0 {offsets = [2, 0], sizes = [1, 128], strides = [1, 1]} : vector<8x128xf32> to vector<1x128xf32>
    %4 = vector.extract_strided_slice %0 {offsets = [3, 0], sizes = [1, 128], strides = [1, 1]} : vector<8x128xf32> to vector<1x128xf32>
    %5 = vector.extract_strided_slice %0 {offsets = [4, 0], sizes = [1, 128], strides = [1, 1]} : vector<8x128xf32> to vector<1x128xf32>
    %6 = vector.extract_strided_slice %0 {offsets = [5, 0], sizes = [1, 128], strides = [1, 1]} : vector<8x128xf32> to vector<1x128xf32>
    %7 = vector.extract_strided_slice %0 {offsets = [6, 0], sizes = [1, 128], strides = [1, 1]} : vector<8x128xf32> to vector<1x128xf32>
    %c0_1 = arith.constant 0 : index
    %c0_2 = arith.constant 0 : index
    %8 = vector.load %arg0[%c0_1, %c0_2] : memref<8x44xbf16, #tpu.memory_space<vmem>>, vector<8x44xbf16>
    %c0_3 = arith.constant 0 : index
    %c0_4 = arith.constant 0 : index
    %9 = vector.load %arg1[%c0_3, %c0_4] : memref<44x128xbf16, #tpu.memory_space<vmem>>, vector<44x128xbf16>
    %cst = arith.constant dense<0.000000e+00> : vector<8x128xf32>
    %10 = tpu.matmul %8, %9, %cst {dimension_numbers = #tpu.dot_dimension_numbers<[1], [0], [0], [1], [0, 0, 1, 1], [], []>} : vector<8x44xbf16>, vector<44x128xbf16>, vector<8x128xf32> -> vector<8x128xf32>
    %11 = vector.broadcast %1 : vector<1x128xf32> to vector<8x128xf32>
    %12 = arith.addf %10, %11 : vector<8x128xf32>
    %cst_5 = arith.constant 0.000000e+00 : f32
    %13 = vector.broadcast %cst_5 : f32 to vector<8x128xf32>
    %14 = arith.maximumf %12, %13 : vector<8x128xf32>
    %cst_6 = arith.constant dense<0.000000e+00> : vector<128xf32>
    %15 = vector.multi_reduction <add>, %14, %cst_6 [0] : vector<8x128xf32> to vector<128xf32>
    %16 = vector.shape_cast %15 : vector<128xf32> to vector<1x128xf32>
    %17 = arith.mulf %14, %14 : vector<8x128xf32>
    %cst_7 = arith.constant dense<0.000000e+00> : vector<128xf32>
    %18 = vector.multi_reduction <add>, %17, %cst_7 [0] : vector<8x128xf32> to vector<128xf32>
    %19 = vector.shape_cast %18 : vector<128xf32> to vector<1x128xf32>
    %cst_8 = arith.constant 1.250000e-01 : f32
    %20 = vector.broadcast %cst_8 : f32 to vector<1x128xf32>
    %21 = arith.mulf %16, %20 : vector<1x128xf32>
    %cst_9 = arith.constant 1.250000e-01 : f32
    %22 = vector.broadcast %cst_9 : f32 to vector<1x128xf32>
    %23 = arith.mulf %19, %22 : vector<1x128xf32>
    %24 = arith.mulf %21, %21 : vector<1x128xf32>
    %25 = arith.subf %23, %24 : vector<1x128xf32>
    %cst_10 = arith.constant 0.000000e+00 : f32
    %26 = vector.broadcast %cst_10 : f32 to vector<1x128xf32>
    %27 = arith.maximumf %25, %26 : vector<1x128xf32>
    %cst_11 = arith.constant 9.99999974E-6 : f32
    %28 = vector.broadcast %cst_11 : f32 to vector<1x128xf32>
    %29 = arith.addf %27, %28 : vector<1x128xf32>
    %30 = math.rsqrt %29 : vector<1x128xf32>
    %31 = arith.mulf %2, %30 : vector<1x128xf32>
    %32 = arith.mulf %21, %31 : vector<1x128xf32>
    %33 = arith.subf %3, %32 : vector<1x128xf32>
    %34 = vector.broadcast %31 : vector<1x128xf32> to vector<8x128xf32>
    %35 = arith.mulf %14, %34 : vector<8x128xf32>
    %36 = vector.broadcast %33 : vector<1x128xf32> to vector<8x128xf32>
    %37 = arith.addf %35, %36 : vector<8x128xf32>
    %38 = arith.truncf %37 : vector<8x128xf32> to vector<8x128xbf16>
    %c0_12 = arith.constant 0 : index
    %c0_13 = arith.constant 0 : index
    %39 = vector.load %arg2[%c0_12, %c0_13] : memref<128x128xbf16, #tpu.memory_space<vmem>>, vector<128x128xbf16>
    %cst_14 = arith.constant dense<0.000000e+00> : vector<8x128xf32>
    %40 = tpu.matmul %38, %39, %cst_14 {dimension_numbers = #tpu.dot_dimension_numbers<[1], [0], [0], [1], [0, 0, 1, 1], [], []>} : vector<8x128xbf16>, vector<128x128xbf16>, vector<8x128xf32> -> vector<8x128xf32>
    %41 = vector.broadcast %4 : vector<1x128xf32> to vector<8x128xf32>
    %42 = arith.addf %40, %41 : vector<8x128xf32>
    %cst_15 = arith.constant 0.000000e+00 : f32
    %43 = vector.broadcast %cst_15 : f32 to vector<8x128xf32>
    %44 = arith.maximumf %42, %43 : vector<8x128xf32>
    %cst_16 = arith.constant dense<0.000000e+00> : vector<128xf32>
    %45 = vector.multi_reduction <add>, %44, %cst_16 [0] : vector<8x128xf32> to vector<128xf32>
    %46 = vector.shape_cast %45 : vector<128xf32> to vector<1x128xf32>
    %47 = arith.mulf %44, %44 : vector<8x128xf32>
    %cst_17 = arith.constant dense<0.000000e+00> : vector<128xf32>
    %48 = vector.multi_reduction <add>, %47, %cst_17 [0] : vector<8x128xf32> to vector<128xf32>
    %49 = vector.shape_cast %48 : vector<128xf32> to vector<1x128xf32>
    %cst_18 = arith.constant 1.250000e-01 : f32
    %50 = vector.broadcast %cst_18 : f32 to vector<1x128xf32>
    %51 = arith.mulf %46, %50 : vector<1x128xf32>
    %cst_19 = arith.constant 1.250000e-01 : f32
    %52 = vector.broadcast %cst_19 : f32 to vector<1x128xf32>
    %53 = arith.mulf %49, %52 : vector<1x128xf32>
    %54 = arith.mulf %51, %51 : vector<1x128xf32>
    %55 = arith.subf %53, %54 : vector<1x128xf32>
    %cst_20 = arith.constant 0.000000e+00 : f32
    %56 = vector.broadcast %cst_20 : f32 to vector<1x128xf32>
    %57 = arith.maximumf %55, %56 : vector<1x128xf32>
    %cst_21 = arith.constant 9.99999974E-6 : f32
    %58 = vector.broadcast %cst_21 : f32 to vector<1x128xf32>
    %59 = arith.addf %57, %58 : vector<1x128xf32>
    %60 = math.rsqrt %59 : vector<1x128xf32>
    %61 = arith.mulf %5, %60 : vector<1x128xf32>
    %62 = arith.mulf %51, %61 : vector<1x128xf32>
    %63 = arith.subf %6, %62 : vector<1x128xf32>
    %64 = vector.broadcast %61 : vector<1x128xf32> to vector<8x128xf32>
    %65 = arith.mulf %44, %64 : vector<8x128xf32>
    %66 = vector.broadcast %63 : vector<1x128xf32> to vector<8x128xf32>
    %67 = arith.addf %65, %66 : vector<8x128xf32>
    %68 = arith.truncf %67 : vector<8x128xf32> to vector<8x128xbf16>
    %c0_22 = arith.constant 0 : index
    %c0_23 = arith.constant 0 : index
    %69 = vector.load %arg3[%c0_22, %c0_23] : memref<128x128xbf16, #tpu.memory_space<vmem>>, vector<128x128xbf16>
    %cst_24 = arith.constant dense<0.000000e+00> : vector<8x128xf32>
    %70 = tpu.matmul %68, %69, %cst_24 {dimension_numbers = #tpu.dot_dimension_numbers<[1], [0], [0], [1], [0, 0, 1, 1], [], []>} : vector<8x128xbf16>, vector<128x128xbf16>, vector<8x128xf32> -> vector<8x128xf32>
    %71 = vector.broadcast %7 : vector<1x128xf32> to vector<8x128xf32>
    %72 = arith.addf %70, %71 : vector<8x128xf32>
    %c0_25 = arith.constant 0 : index
    %c0_26 = arith.constant 0 : index
    %73 = vector.load %arg5[%c0_25, %c0_26] : memref<8x128xf32, #tpu.memory_space<vmem>>, vector<8x128xf32>
    tpu.vector_store %arg5[%c0_25, %c0_26], %72 {strides = array<i32>} : memref<8x128xf32, #tpu.memory_space<vmem>>, vector<8x128xf32>,
    return
  }
}

</mosaic_0001>

<llo_original>
// kernel: clinician_forward.1
$region0: #{clinician_forward.1}
  #allocation0 [shape = 'u32[]', space=smem, size = 0x4, offset = 0x4, fixed_abs, tag = 'smem constant byte address 0x4 - core index']
  #allocation1 [shape = 'u32[72,128]{1,0:T(1,128)}', space=vmem, size = 0x9000, scoped, tag = 'internal scratch']
  %s0 = inlined_call_operand.vmem [shape: bf16[8,44], index: 0, kind: input, shape index: {}]
  %s1 = inlined_call_operand.hbm [shape: bf16[44,128], index: 1, kind: input, shape index: {}]
  %s2 = inlined_call_operand.hbm [shape: bf16[128,128], index: 2, kind: input, shape index: {}]
  %s3 = inlined_call_operand.hbm [shape: bf16[128,128], index: 3, kind: input, shape index: {}]
  %s4 = inlined_call_operand.vmem [shape: f32[8,128], index: 4, kind: input, shape index: {}]
  %s5 = inlined_call_operand.hbm [shape: f32[8,128], index: 5, kind: output, shape index: {}]
  %s6 = sld [smem:[#allocation0]]
  $region42: #{clinician_forward.1} parent=0
    _
  %s8 = ssub.s32 1, %s6
  %s9 = scalar_select 0, %s8, %s6
  $region1: #{clinician_forward.1} parent=0
    #allocation2 [shape = 'u8[12288]{0}', space=vmem, size = 0x3000, scoped, tag = 'input window, operand 1, single buffered']
    #allocation3 [shape = 's32[1]{0}', space=sflag, size = 0x4, scoped, tag = 'scoped memory for clinician_forward.1']
    #allocation4 [shape = 's32[1]{0}', space=sflag, size = 0x4, scoped, tag = 'scoped memory for clinician_forward.1']
    #allocation5 [shape = 'u8[32768]{0}', space=vmem, size = 0x8000, scoped, tag = 'input window, operand 2, single buffered']
    #allocation6 [shape = 's32[1]{0}', space=sflag, size = 0x4, scoped, tag = 'scoped memory for clinician_forward.1']
    #allocation7 [shape = 'u8[32768]{0}', space=vmem, size = 0x8000, scoped, tag = 'input window, operand 3, single buffered']
    #allocation8 [shape = 'u8[4096]{0}', space=vmem, size = 0x1000, scoped, tag = 'output window, operand 0, single buffered']
    %10 = vsyncpa [#allocation3], 0
    %11 = vsyncpa [#allocation6], 0
    %12 = vsyncpa [#allocation4], 0
    // Predicated region
    $region2: #{clinician_forward.1} parent=1 // pred_check
      _
    $region3: #{clinician_forward.1} parent=1 // pred_check_branch
      %14 = sbr.rel (0) target = $region5
    $region4: #{clinician_forward.1} parent=1 // pred_region
      _
    $region5: #{clinician_forward.1} parent=1 // pred_fallthru
      _
    // Predicated region
    $region6: #{clinician_forward.1} parent=1 // pred_check
      _
    $region7: #{clinician_forward.1} parent=1 // pred_check_branch
      %16 = sbr.rel (0) target = $region9
    $region8: #{clinician_forward.1} parent=1 // pred_region
      %18 = vsyncadd [#allocation3], 0
      %s19 = sshll.u32 %s1, 4
      %s20 = int_to_ptr.hbm [resolvable:$true] %s19
      %s21 = sshll.u32 [#allocation2], 4
      %s22 = int_to_ptr.vmem [resolvable:$true] %s21
      %27 = dma.hbm_to_vmem [thread:$0]  %s20, 384, %s22, [#allocation3], 64, 64, 4
    $region9: #{clinician_forward.1} parent=1 // pred_fallthru
      _
    // Predicated region
    $region10: #{clinician_forward.1} parent=1 // pred_check
      _
    $region11: #{clinician_forward.1} parent=1 // pred_check_branch
      %29 = sbr.rel (0) target = $region13
    $region12: #{clinician_forward.1} parent=1 // pred_region
      %31 = vsyncadd [#allocation6], 0
      %s32 = sshll.u32 %s2, 4
      %s33 = int_to_ptr.hbm [resolvable:$true] %s32
      %s34 = sshll.u32 [#allocation5], 4
      %s35 = int_to_ptr.vmem [resolvable:$true] %s34
      %40 = dma.hbm_to_vmem [thread:$0]  %s33, 1024, %s35, [#allocation6], 64, 64, 4
    $region13: #{clinician_forward.1} parent=1 // pred_fallthru
      _
    // Predicated region
    $region14: #{clinician_forward.1} parent=1 // pred_check
      _
    $region15: #{clinician_forward.1} parent=1 // pred_check_branch
      %42 = sbr.rel (0) target = $region17
    $region16: #{clinician_forward.1} parent=1 // pred_region
      %44 = vsyncadd [#allocation6], 0
      %s45 = sshll.u32 %s3, 4
      %s46 = int_to_ptr.hbm [resolvable:$true] %s45
      %s47 = sshll.u32 [#allocation7], 4
      %s48 = int_to_ptr.vmem [resolvable:$true] %s47
      %53 = dma.hbm_to_vmem [thread:$0]  %s46, 1024, %s48, [#allocation6], 64, 64, 4
    $region17: #{clinician_forward.1} parent=1 // pred_fallthru
      _
    // Predicated region
    $region18: #{clinician_forward.1} parent=1 // pred_check
      _
    $region19: #{clinician_forward.1} parent=1 // pred_check_branch
      %55 = sbr.rel (0) target = $region21
    $region20: #{clinician_forward.1} parent=1 // pred_region
      _
    $region21: #{clinician_forward.1} parent=1 // pred_fallthru
      _
    // Predicated region
    $region22: #{clinician_forward.1} parent=1 // pred_check
      _
    $region23: #{clinician_forward.1} parent=1 // pred_check_branch
      %57 = sbr.rel (0) target = $region25
    $region24: #{clinician_forward.1} parent=1 // pred_region
      %59 = dma.done [#allocation3], 384
    $region25: #{clinician_forward.1} parent=1 // pred_fallthru
      _
    // Predicated region
    $region26: #{clinician_forward.1} parent=1 // pred_check
      _
    $region27: #{clinician_forward.1} parent=1 // pred_check_branch
      %61 = sbr.rel (0) target = $region29
    $region28: #{clinician_forward.1} parent=1 // pred_region
      %63 = dma.done [#allocation6], 1024
    $region29: #{clinician_forward.1} parent=1 // pred_fallthru
      _
    // Predicated region
    $region30: #{clinician_forward.1} parent=1 // pred_check
      _
    $region31: #{clinician_forward.1} parent=1 // pred_check_branch
      %65 = sbr.rel (0) target = $region33
    $region32: #{clinician_forward.1} parent=1 // pred_region
      %67 = dma.done [#allocation6], 1024
    $region33: #{clinician_forward.1} parent=1 // pred_fallthru
      _
    %v69 = vld [vmem:[%s4] sm:$0xff]
    %v70 = vld [vmem:[%s0] sm:$0xf]
    %v71 = vld [vmem:[#allocation2] sm:$0xf]
    %v72 = vld [vmem:[#allocation2 + $0x4] sm:$0xf]
    %v73 = vld [vmem:[#allocation2 + $0x8] sm:$0xf]
    %v74 = vld [vmem:[#allocation2 + $0xc] sm:$0xf]
    %v75 = vld [vmem:[#allocation2 + $0x10] sm:$0xf]
    %v76 = vld [vmem:[#allocation2 + $0x14] sm:$0x3]
    %v77 = vperm.slane %v69, 0
    %v84 = vunpack.c.l.b16 %v71
    %v85 = vunpack.c.l.b16 %v72
    %v86 = vunpack.c.l.b16 %v73
    %v87 = vunpack.c.l.b16 %v74
    %v88 = vunpack.c.l.b16 %v75
    %v89 = vunpack.c.l.b16 %v76
    %v90 = vpack.c.b16 %v85, %v84
    %v91 = vpack.c.b16 %v87, %v86
    %v92 = vpack.c.b16 %v89, %v88
    %vm95 = vcmask 359424
    %v97 = vsel %vm95, %v70, 0
    %vm99 = vcmask 1045504
    %v101 = vsel %vm99, %v92, 0
    %103 = vmatpush.bf16.msra.mxu0 0
    %104 = vmatpush.bf16.msra.mxu0 0
    %105 = vmatpush.bf16.msra.mxu0 0
    %106 = vmatpush.bf16.msra.mxu0 0
    %107 = vmatpush.bf16.msra.mxu0 0
    %108 = vmatpush.bf16.msra.mxu0 %v101
    %109 = vmatpush.bf16.msra.mxu0 %v91
    %110 = vmatpush.bf16.msra.mxu0 %v90
    %111 = vmatmul.bf16.gmra.mxu0 %v97
    %v112 = vpop.f32.mrf.mxu0
    %v113 = vadd.f32 %v77, %v112
    %v114 = vpop.f32.mrf.mxu0
    %115 = vdwg.mxu0
    %v116 = vmax.f32 %v113, 0.0
    %v117 = vrot.slane %v116, 4
    %v118 = vadd.f32 %v116, %v117
    %v119 = vrot.slane %v118, 2
    %v120 = vadd.f32 %v118, %v119
    %v121 = vrot.slane %v120, 1
    %v122 = vadd.f32 %v120, %v121
    %v123 = vmul.f32 %v116, %v116
    %v124 = vrot.slane %v123, 4
    %v125 = vadd.f32 %v123, %v124
    %v126 = vrot.slane %v125, 2
    %v127 = vadd.f32 %v125, %v126
    %v128 = vrot.slane %v127, 1
    %v129 = vadd.f32 %v127, %v128
    %v130 = vmul.f32 %v122, 0.125
    %v131 = vmul.f32 %v129, 0.125
    %v132 = vmul.f32 %v130, %v130
    %v133 = vsub.f32 %v131, %v132
    %v134 = vmax.f32 %v133, 0.0
    %v135 = vadd.f32 %v134, 1e-05
    %v136 = vrsqrt.pop %v135
    %v137 = vmul.f32 %v136, %v135
    %v138 = vmul.f32 %v137, %v136
    %v139 = vmul.f32 0.5, %v138
    %v140 = vsub.f32 1.5, %v139
    %v141 = vmul.f32 %v136, %v140
    %vm142 = vweird.f32 %v135
    %vm143 = vweird.f32 %v136
    %vm144 = vmor %vm142, %vm143
    %v145 = vsel %vm144, %v136, %v141
    %v146 = vmul.f32 %v69, %v145
    %v147 = vmul.f32 %v130, %v146
    %v149 = vrot.slane %v147, 7
    %v151 = vsub.f32 %v69, %v149
    %v152 = vperm.slane %v146, 1
    %v153 = vmul.f32 %v116, %v152
    %v154 = vperm.slane %v151, 2
    %v155 = vadd.f32 %v153, %v154
    %v156 = vpack.c.bf16 %v155, %v155
    %v157 = vld [vmem:[#allocation5] sm:$0xf]
    %v158 = vld [vmem:[#allocation5 + $0x4] sm:$0xf]
    %v159 = vld [vmem:[#allocation5 + $0x8] sm:$0xf]
    %v160 = vld [vmem:[#allocation5 + $0xc] sm:$0xf]
    %v161 = vld [vmem:[#allocation5 + $0x10] sm:$0xf]
    %v162 = vld [vmem:[#allocation5 + $0x14] sm:$0xf]
    %v163 = vld [vmem:[#allocation5 + $0x18] sm:$0xf]
    %v164 = vld [vmem:[#allocation5 + $0x1c] sm:$0xf]
    %v165 = vld [vmem:[#allocation5 + $0x20] sm:$0xf]
    %v166 = vld [vmem:[#allocation5 + $0x24] sm:$0xf]
    %v167 = vld [vmem:[#allocation5 + $0x28] sm:$0xf]
    %v168 = vld [vmem:[#allocation5 + $0x2c] sm:$0xf]
    %v169 = vld [vmem:[#allocation5 + $0x30] sm:$0xf]
    %v170 = vld [vmem:[#allocation5 + $0x34] sm:$0xf]
    %v171 = vld [vmem:[#allocation5 + $0x38] sm:$0xf]
    %v172 = vld [vmem:[#allocation5 + $0x3c] sm:$0xf]
    %v173 = vperm.slane %v69, 3
    %v190 = vunpack.c.l.b16 %v157
    %v191 = vunpack.c.l.b16 %v158
    %v192 = vunpack.c.l.b16 %v159
    %v193 = vunpack.c.l.b16 %v160
    %v194 = vunpack.c.l.b16 %v161
    %v195 = vunpack.c.l.b16 %v162
    %v196 = vunpack.c.l.b16 %v163
    %v197 = vunpack.c.l.b16 %v164
    %v198 = vunpack.c.l.b16 %v165
    %v199 = vunpack.c.l.b16 %v166
    %v200 = vunpack.c.l.b16 %v167
    %v201 = vunpack.c.l.b16 %v168
    %v202 = vunpack.c.l.b16 %v169
    %v203 = vunpack.c.l.b16 %v170
    %v204 = vunpack.c.l.b16 %v171
    %v205 = vunpack.c.l.b16 %v172
    %v206 = vpack.c.b16 %v191, %v190
    %v207 = vpack.c.b16 %v193, %v192
    %v208 = vpack.c.b16 %v195, %v194
    %v209 = vpack.c.b16 %v197, %v196
    %v210 = vpack.c.b16 %v199, %v198
    %v211 = vpack.c.b16 %v201, %v200
    %v212 = vpack.c.b16 %v203, %v202
    %v213 = vpack.c.b16 %v205, %v204
    %222 = vmatpush.bf16.msra.mxu0 %v213
    %223 = vmatpush.bf16.msra.mxu0 %v212
    %224 = vmatpush.bf16.msra.mxu0 %v211
    %225 = vmatpush.bf16.msra.mxu0 %v210
    %226 = vmatpush.bf16.msra.mxu0 %v209
    %227 = vmatpush.bf16.msra.mxu0 %v208
    %228 = vmatpush.bf16.msra.mxu0 %v207
    %229 = vmatpush.bf16.msra.mxu0 %v206
    %230 = vmatmul.bf16.gmra.mxu0 %v156
    %v231 = vpop.f32.mrf.mxu0
    %v232 = vadd.f32 %v173, %v231
    %v233 = vpop.f32.mrf.mxu0
    %234 = vdwg.mxu0
    %v235 = vmax.f32 %v232, 0.0
    %v236 = vrot.slane %v235, 4
    %v237 = vadd.f32 %v235, %v236
    %v238 = vrot.slane %v237, 2
    %v239 = vadd.f32 %v237, %v238
    %v240 = vrot.slane %v239, 1
    %v241 = vadd.f32 %v239, %v240
    %v242 = vmul.f32 %v235, %v235
    %v243 = vrot.slane %v242, 4
    %v244 = vadd.f32 %v242, %v243
    %v245 = vrot.slane %v244, 2
    %v246 = vadd.f32 %v244, %v245
    %v247 = vrot.slane %v246, 1
    %v248 = vadd.f32 %v246, %v247
    %v249 = vmul.f32 %v241, 0.125
    %v250 = vmul.f32 %v248, 0.125
    %v251 = vmul.f32 %v249, %v249
    %v252 = vsub.f32 %v250, %v251
    %v253 = vmax.f32 %v252, 0.0
    %v254 = vadd.f32 %v253, 1e-05
    %v255 = vrsqrt.pop %v254
    %v256 = vmul.f32 %v255, %v254
    %v257 = vmul.f32 %v256, %v255
    %v258 = vmul.f32 0.5, %v257
    %v259 = vsub.f32 1.5, %v258
    %v260 = vmul.f32 %v255, %v259
    %vm261 = vweird.f32 %v254
    %vm262 = vweird.f32 %v255
    %vm263 = vmor %vm261, %vm262
    %v264 = vsel %vm263, %v255, %v260
    %v265 = vmul.f32 %v69, %v264
    %v266 = vmul.f32 %v249, %v265
    %v268 = vrot.slane %v266, 7
    %v270 = vsub.f32 %v69, %v268
    %v271 = vperm.slane %v265, 4
    %v272 = vmul.f32 %v235, %v271
    %v273 = vperm.slane %v270, 5
    %v274 = vadd.f32 %v272, %v273
    %v275 = vpack.c.bf16 %v274, %v274
    %v276 = vld [vmem:[#allocation7] sm:$0xf]
    %v277 = vld [vmem:[#allocation7 + $0x4] sm:$0xf]
    %v278 = vld [vmem:[#allocation7 + $0x8] sm:$0xf]
    %v279 = vld [vmem:[#allocation7 + $0xc] sm:$0xf]
    %v280 = vld [vmem:[#allocation7 + $0x10] sm:$0xf]
    %v281 = vld [vmem:[#allocation7 + $0x14] sm:$0xf]
    %v282 = vld [vmem:[#allocation7 + $0x18] sm:$0xf]
    %v283 = vld [vmem:[#allocation7 + $0x1c] sm:$0xf]
    %v284 = vld [vmem:[#allocation7 + $0x20] sm:$0xf]
    %v285 = vld [vmem:[#allocation7 + $0x24] sm:$0xf]
    %v286 = vld [vmem:[#allocation7 + $0x28] sm:$0xf]
    %v287 = vld [vmem:[#allocation7 + $0x2c] sm:$0xf]
    %v288 = vld [vmem:[#allocation7 + $0x30] sm:$0xf]
    %v289 = vld [vmem:[#allocation7 + $0x34] sm:$0xf]
    %v290 = vld [vmem:[#allocation7 + $0x38] sm:$0xf]
    %v291 = vld [vmem:[#allocation7 + $0x3c] sm:$0xf]
    %v292 = vperm.slane %v69, 6
    %v309 = vunpack.c.l.b16 %v276
    %v310 = vunpack.c.l.b16 %v277
    %v311 = vunpack.c.l.b16 %v278
    %v312 = vunpack.c.l.b16 %v279
    %v313 = vunpack.c.l.b16 %v280
    %v314 = vunpack.c.l.b16 %v281
    %v315 = vunpack.c.l.b16 %v282
    %v316 = vunpack.c.l.b16 %v283
    %v317 = vunpack.c.l.b16 %v284
    %v318 = vunpack.c.l.b16 %v285
    %v319 = vunpack.c.l.b16 %v286
    %v320 = vunpack.c.l.b16 %v287
    %v321 = vunpack.c.l.b16 %v288
    %v322 = vunpack.c.l.b16 %v289
    %v323 = vunpack.c.l.b16 %v290
    %v324 = vunpack.c.l.b16 %v291
    %v325 = vpack.c.b16 %v310, %v309
    %v326 = vpack.c.b16 %v312, %v311
    %v327 = vpack.c.b16 %v314, %v313
    %v328 = vpack.c.b16 %v316, %v315
    %v329 = vpack.c.b16 %v318, %v317
    %v330 = vpack.c.b16 %v320, %v319
    %v331 = vpack.c.b16 %v322, %v321
    %v332 = vpack.c.b16 %v324, %v323
    %341 = vmatpush.bf16.msra.mxu0 %v332
    %342 = vmatpush.bf16.msra.mxu0 %v331
    %343 = vmatpush.bf16.msra.mxu0 %v330
    %344 = vmatpush.bf16.msra.mxu0 %v329
    %345 = vmatpush.bf16.msra.mxu0 %v328
    %346 = vmatpush.bf16.msra.mxu0 %v327
    %347 = vmatpush.bf16.msra.mxu0 %v326
    %348 = vmatpush.bf16.msra.mxu0 %v325
    %349 = vmatmul.bf16.gmra.mxu0 %v275
    %v350 = vpop.f32.mrf.mxu0
    %v351 = vadd.f32 %v292, %v350
    %v352 = vpop.f32.mrf.mxu0
    %353 = vdwg.mxu0
    %354 = vst [vmem:[#allocation8] sm:$0xff] %v351
    // Predicated region
    $region34: #{clinician_forward.1} parent=1 // pred_check
      _
    $region35: #{clinician_forward.1} parent=1 // pred_check_branch
      %356 = sbr.rel (0) target = $region37
    $region36: #{clinician_forward.1} parent=1 // pred_region
      %358 = vsyncadd [#allocation4], 0
      %s360 = sshll.u32 [#allocation8], 4
      %s361 = int_to_ptr.vmem [resolvable:$true] %s360
      %s362 = sshll.u32 %s5, 4
      %s363 = int_to_ptr.hbm [resolvable:$true] %s362
      %365 = dma.vmem_to_hbm [thread:$0]  %s361, 128, %s363, [#allocation4]
    $region37: #{clinician_forward.1} parent=1 // pred_fallthru
      _
    // Predicated region
    $region38: #{clinician_forward.1} parent=1 // pred_check
      _
    $region39: #{clinician_forward.1} parent=1 // pred_check_branch
      %367 = sbr.rel (0) target = $region41
    $region40: #{clinician_forward.1} parent=1 // pred_region
      %369 = dma.done [#allocation4], 128
    $region41: #{clinician_forward.1} parent=1 // pred_fallthru
      _
    %370 = vsyncpa [#allocation3], 1
    %371 = vsyncpa [#allocation6], 1
    %372 = vsyncpa [#allocation4], 1

</llo_original>
